<compile_context>
chip_gen: v5e
topology: v5e:2x2
jax: 0.10.0
libtpu: 0.0.40
codegen_flags: <defaults>
</compile_context>

<pallas_src>
import functools

import jax
import jax.numpy as jnp
from jax.experimental import pallas as pl


def _ddcf_kernel(x_ref, w1t_ref, b1_ref, w2t_ref, b2_ref, w3t_ref, b3_ref,
                 o_ref, *, n_valid_rows, mask_rows):
    # fc1 + ReLU: MXU matmul with f32 accumulation, bias + ReLU on the VPU.
    h = jnp.dot(x_ref[...], w1t_ref[...], preferred_element_type=jnp.float32)
    h = jnp.maximum(h + b1_ref[...], 0.0)

    # Branch predicate.  mean(h) > 0  <=>  sum(h) > 0 (h >= 0, count > 0).
    # Padded hidden columns are exactly zero (zero weights + zero bias), so
    # only padded BATCH rows (which hold relu(b1)) must be excluded.  Use a
    # full-tile reduce with a VPU mask rather than a non-aligned slice.
    if mask_rows:
        rows = jax.lax.broadcasted_iota(jnp.int32, h.shape, 0)
        h_for_sum = jnp.where(rows < n_valid_rows, h, 0.0)
    else:
        h_for_sum = h
    take_fc2 = jnp.sum(h_for_sum) > 0.0

    # Only the taken branch's matmul executes (scf.if); both weights are
    # already VMEM-resident via their BlockSpecs, so there is no DMA stall
    # between the two MXU phases.  Bias is folded into each branch.
    @pl.when(take_fc2)
    def _():
        o_ref[...] = (
            jnp.dot(h, w2t_ref[...], preferred_element_type=jnp.float32)
            + b2_ref[...]
        )

    @pl.when(jnp.logical_not(take_fc2))
    def _():
        o_ref[...] = (
            jnp.dot(h, w3t_ref[...], preferred_element_type=jnp.float32)
            + b3_ref[...]
        )


def _round_up(n, m):
    return ((n + m - 1) // m) * m


def dd_control_flow_nn(x, w1, b1, w2, b2, w3, b3):
    """Pallas implementation of DDControlFlowNN.forward.

    x:  (B, input_size)        float32
    w1: (hidden, input_size)   b1: (1, hidden)      (PyTorch nn.Linear layout)
    w2: (output, hidden)       b2: (1, output)
    w3: (output, hidden)       b3: (1, output)
    returns (B, output) float32
    """
    B, in_size = x.shape
    hidden = w1.shape[0]
    out_size = w2.shape[0]

    f32 = jnp.float32

    # Lane/sublane-aligned, lane-dense padded shapes.
    B_pad = _round_up(B, 8)
    in_pad = _round_up(in_size, 128)
    hid_pad = _round_up(hidden, 128)
    out_pad = _round_up(out_size, 128)

    # Pre-transpose weights once (PyTorch (out,in) -> (in,out)) and zero-pad.
    # Zero padding keeps fc1 outputs / ReLU / predicate / fc2|fc3 unchanged.
    w1t = jnp.zeros((in_pad, hid_pad), f32).at[:in_size, :hidden].set(
        w1.T.astype(f32))
    b1p = jnp.zeros((1, hid_pad), f32).at[:, :hidden].set(
        b1.reshape(1, -1).astype(f32))
    w2t = jnp.zeros((hid_pad, out_pad), f32).at[:hidden, :out_size].set(
        w2.T.astype(f32))
    b2p = jnp.zeros((1, out_pad), f32).at[:, :out_size].set(
        b2.reshape(1, -1).astype(f32))
    w3t = jnp.zeros((hid_pad, out_pad), f32).at[:hidden, :out_size].set(
        w3.T.astype(f32))
    b3p = jnp.zeros((1, out_pad), f32).at[:, :out_size].set(
        b3.reshape(1, -1).astype(f32))

    x_pad = x.astype(f32)
    if (B_pad, in_pad) != (B, in_size):
        x_pad = jnp.zeros((B_pad, in_pad), f32).at[:B, :in_size].set(
            x.astype(f32))

    kernel = functools.partial(
        _ddcf_kernel, n_valid_rows=B, mask_rows=(B_pad != B))

    full = lambda a: pl.BlockSpec(a.shape, lambda: (0,) * a.ndim)

    out_padded = pl.pallas_call(
        kernel,
        out_shape=jax.ShapeDtypeStruct((B_pad, out_pad), f32),
        in_specs=[full(x_pad), full(w1t), full(b1p),
                  full(w2t), full(b2p),
                  full(w3t), full(b3p)],
        out_specs=pl.BlockSpec((B_pad, out_pad), lambda: (0, 0)),
    )(x_pad, w1t, b1p, w2t, b2p, w3t, b3p)

    return out_padded[:B, :out_size]


def _init_linear(key, out_features, in_features):
    """Deterministic PyTorch-style nn.Linear init: U(-1/sqrt(in), 1/sqrt(in))."""
    kw, kb = jax.random.split(key)
    bound = 1.0 / jnp.sqrt(jnp.float32(in_features))
    w = jax.random.uniform(kw, (out_features, in_features), jnp.float32,
                           -bound, bound)
    b = jax.random.uniform(kb, (1, out_features), jnp.float32, -bound, bound)
    return w, b


def _reference(x, w1, b1, w2, b2, w3, b3):
    h = jnp.maximum(x @ w1.T + b1, 0.0)
    return jax.lax.cond(
        jnp.mean(h) > 0.0,
        lambda h: h @ w2.T + b2,
        lambda h: h @ w3.T + b3,
        h,
    )


if __name__ == "__main__":
    # Small shapes consistent with Linear(input)->ReLU->Linear(hidden->output).
    batch, input_size, hidden_size, output_size = 8, 32, 32, 16

    key = jax.random.PRNGKey(0)
    kx, k1, k2, k3 = jax.random.split(key, 4)

    x = jax.random.normal(kx, (batch, input_size), jnp.float32)
    w1, b1 = _init_linear(k1, hidden_size, input_size)
    w2, b2 = _init_linear(k2, output_size, hidden_size)
    w3, b3 = _init_linear(k3, output_size, hidden_size)

    out = dd_control_flow_nn(x, w1, b1, w2, b2, w3, b3)
    out = jax.block_until_ready(out)

    ref = _reference(x, w1, b1, w2, b2, w3, b3)
    assert out.shape == (batch, output_size)
    assert jnp.allclose(out, ref, atol=1e-5, rtol=1e-5)

    print("KERNEL_OK")
</pallas_src>

<mosaic_0001>
module attributes {stable_mosaic.version = 11 : i64} {
  func.func @_ddcf_kernel(%arg0: memref<8x128xf32, #tpu.memory_space<vmem>>, %arg1: memref<128x128xf32, #tpu.memory_space<vmem>>, %arg2: memref<1x128xf32, #tpu.memory_space<vmem>>, %arg3: memref<128x128xf32, #tpu.memory_space<vmem>>, %arg4: memref<1x128xf32, #tpu.memory_space<vmem>>, %arg5: memref<128x128xf32, #tpu.memory_space<vmem>>, %arg6: memref<1x128xf32, #tpu.memory_space<vmem>>, %arg7: memref<8x128xf32, #tpu.memory_space<vmem>>) attributes {dimension_semantics = [], scalar_prefetch = 0 : i64, scratch_operands = 0 : i64, tpu.core_type = #tpu.core_type<tc>} {
    %c0 = arith.constant 0 : index
    %c0_0 = arith.constant 0 : index
    %0 = vector.load %arg0[%c0, %c0_0] : memref<8x128xf32, #tpu.memory_space<vmem>>, vector<8x128xf32>
    %c0_1 = arith.constant 0 : index
    %c0_2 = arith.constant 0 : index
    %1 = vector.load %arg1[%c0_1, %c0_2] : memref<128x128xf32, #tpu.memory_space<vmem>>, vector<128x128xf32>
    %cst = arith.constant dense<0.000000e+00> : vector<8x128xf32>
    %2 = tpu.matmul %0, %1, %cst {dimension_numbers = #tpu.dot_dimension_numbers<[1], [0], [0], [1], [0, 0, 1, 1], [], []>} : vector<8x128xf32>, vector<128x128xf32>, vector<8x128xf32> -> vector<8x128xf32>
    %c0_3 = arith.constant 0 : index
    %c0_4 = arith.constant 0 : index
    %3 = vector.load %arg2[%c0_3, %c0_4] : memref<1x128xf32, #tpu.memory_space<vmem>>, vector<1x128xf32>
    %4 = vector.broadcast %3 : vector<1x128xf32> to vector<8x128xf32>
    %5 = arith.addf %2, %4 : vector<8x128xf32>
    %cst_5 = arith.constant 0.000000e+00 : f32
    %6 = vector.broadcast %cst_5 : f32 to vector<8x128xf32>
    %7 = arith.maximumf %5, %6 : vector<8x128xf32>
    %8 = vector.shape_cast %7 : vector<8x128xf32> to vector<1x8x128xf32>
    %cst_6 = arith.constant dense<0.000000e+00> : vector<1xf32>
    %9 = vector.multi_reduction <add>, %8, %cst_6 [1, 2] : vector<1x8x128xf32> to vector<1xf32>
    %10 = vector.shape_cast %9 : vector<1xf32> to vector<1x1x1xf32>
    %11 = vector.extract %10[0, 0, 0] : f32 from vector<1x1x1xf32>
    %cst_7 = arith.constant 0.000000e+00 : f32
    %12 = arith.cmpf ogt, %11, %cst_7 : f32
    %13 = arith.extui %12 : i1 to i32
    %c0_i32 = arith.constant 0 : i32
    %14 = arith.cmpi ne, %13, %c0_i32 : i32
    scf.if %14 {
      %c0_9 = arith.constant 0 : index
      %c0_10 = arith.constant 0 : index
      %18 = vector.load %arg3[%c0_9, %c0_10] : memref<128x128xf32, #tpu.memory_space<vmem>>, vector<128x128xf32>
      %cst_11 = arith.constant dense<0.000000e+00> : vector<8x128xf32>
      %19 = tpu.matmul %7, %18, %cst_11 {dimension_numbers = #tpu.dot_dimension_numbers<[1], [0], [0], [1], [0, 0, 1, 1], [], []>} : vector<8x128xf32>, vector<128x128xf32>, vector<8x128xf32> -> vector<8x128xf32>
      %c0_12 = arith.constant 0 : index
      %c0_13 = arith.constant 0 : index
      %20 = vector.load %arg4[%c0_12, %c0_13] : memref<1x128xf32, #tpu.memory_space<vmem>>, vector<1x128xf32>
      %21 = vector.broadcast %20 : vector<1x128xf32> to vector<8x128xf32>
      %22 = arith.addf %19, %21 : vector<8x128xf32>
      %c0_14 = arith.constant 0 : index
      %c0_15 = arith.constant 0 : index
      %23 = vector.load %arg7[%c0_14, %c0_15] : memref<8x128xf32, #tpu.memory_space<vmem>>, vector<8x128xf32>
      tpu.vector_store %arg7[%c0_14, %c0_15], %22 {strides = array<i32>} : memref<8x128xf32, #tpu.memory_space<vmem>>, vector<8x128xf32>,
    } else {
    }
    %true = arith.constant true
    %15 = arith.xori %12, %true : i1
    %16 = arith.extui %15 : i1 to i32
    %c0_i32_8 = arith.constant 0 : i32
    %17 = arith.cmpi ne, %16, %c0_i32_8 : i32
    scf.if %17 {
      %c0_9 = arith.constant 0 : index
      %c0_10 = arith.constant 0 : index
      %18 = vector.load %arg5[%c0_9, %c0_10] : memref<128x128xf32, #tpu.memory_space<vmem>>, vector<128x128xf32>
      %cst_11 = arith.constant dense<0.000000e+00> : vector<8x128xf32>
      %19 = tpu.matmul %7, %18, %cst_11 {dimension_numbers = #tpu.dot_dimension_numbers<[1], [0], [0], [1], [0, 0, 1, 1], [], []>} : vector<8x128xf32>, vector<128x128xf32>, vector<8x128xf32> -> vector<8x128xf32>
      %c0_12 = arith.constant 0 : index
      %c0_13 = arith.constant 0 : index
      %20 = vector.load %arg6[%c0_12, %c0_13] : memref<1x128xf32, #tpu.memory_space<vmem>>, vector<1x128xf32>
      %21 = vector.broadcast %20 : vector<1x128xf32> to vector<8x128xf32>
      %22 = arith.addf %19, %21 : vector<8x128xf32>
      %c0_14 = arith.constant 0 : index
      %c0_15 = arith.constant 0 : index
      %23 = vector.load %arg7[%c0_14, %c0_15] : memref<8x128xf32, #tpu.memory_space<vmem>>, vector<8x128xf32>
      tpu.vector_store %arg7[%c0_14, %c0_15], %22 {strides = array<i32>} : memref<8x128xf32, #tpu.memory_space<vmem>>, vector<8x128xf32>,
    } else {
    }
    return
  }
}

</mosaic_0001>

<llo_original>
// kernel: tpu_custom_call.1
$region0: #{tpu_custom_call.1}
  #allocation0 [shape = 'u32[]', space=smem, size = 0x4, offset = 0x4, fixed_abs, tag = 'smem constant byte address 0x4 - core index']
  #allocation1 [shape = 'u32[72,128]{1,0:T(1,128)}', space=vmem, size = 0x9000, scoped, tag = 'internal scratch']
  %s0 = inlined_call_operand.hbm [shape: f32[8,128], index: 0, kind: input, shape index: {}]
  %s1 = inlined_call_operand.hbm [shape: f32[128,128], index: 1, kind: input, shape index: {}]
  %s2 = inlined_call_operand.vmem [shape: f32[1,128], index: 2, kind: input, shape index: {}]
  %s3 = inlined_call_operand.hbm [shape: f32[128,128], index: 3, kind: input, shape index: {}]
  %s4 = inlined_call_operand.vmem [shape: f32[1,128], index: 4, kind: input, shape index: {}]
  %s5 = inlined_call_operand.hbm [shape: f32[128,128], index: 5, kind: input, shape index: {}]
  %s6 = inlined_call_operand.vmem [shape: f32[1,128], index: 6, kind: input, shape index: {}]
  %s7 = inlined_call_operand.hbm [shape: f32[8,128], index: 7, kind: output, shape index: {}]
  %s8 = sld [smem:[#allocation0]]
  $region62: #{tpu_custom_call.1} parent=0
    _
  %s10 = ssub.s32 1, %s8
  %s11 = scalar_select 0, %s10, %s8
  $region1: #{tpu_custom_call.1} parent=0
    #allocation2 [shape = 'u8[4096]{0}', space=vmem, size = 0x1000, scoped, tag = 'input window, operand 0, single buffered']
    #allocation3 [shape = 's32[1]{0}', space=sflag, size = 0x4, scoped, tag = 'scoped memory for tpu_custom_call.1']
    #allocation4 [shape = 's32[1]{0}', space=sflag, size = 0x4, scoped, tag = 'scoped memory for tpu_custom_call.1']
    #allocation5 [shape = 'u8[65536]{0}', space=vmem, size = 0x10000, scoped, tag = 'input window, operand 1, single buffered']
    #allocation6 [shape = 's32[1]{0}', space=sflag, size = 0x4, scoped, tag = 'scoped memory for tpu_custom_call.1']
    #allocation7 [shape = 'u8[65536]{0}', space=vmem, size = 0x10000, scoped, tag = 'input window, operand 3, single buffered']
    #allocation8 [shape = 'u8[65536]{0}', space=vmem, size = 0x10000, scoped, tag = 'input window, operand 5, single buffered']
    #allocation9 [shape = 's32[1]{0}', space=sflag, size = 0x4, scoped, tag = 'scoped memory for tpu_custom_call.1']
    #allocation10 [shape = 'u8[4096]{0}', space=vmem, size = 0x1000, scoped, tag = 'output window, operand 0, single buffered']
    %12 = vsyncpa [#allocation3], 0
    %13 = vsyncpa [#allocation6], 0
    %14 = vsyncpa [#allocation9], 0
    %15 = vsyncpa [#allocation4], 0
    // Predicated region
    $region2: #{tpu_custom_call.1} parent=1 // pred_check
      _
    $region3: #{tpu_custom_call.1} parent=1 // pred_check_branch
      %17 = sbr.rel (0) target = $region5
    $region4: #{tpu_custom_call.1} parent=1 // pred_region
      %19 = vsyncadd [#allocation3], 0
      %s21 = sshll.u32 %s0, 4
      %s22 = int_to_ptr.hbm [resolvable:$true] %s21
      %s23 = sshll.u32 [#allocation2], 4
      %s24 = int_to_ptr.vmem [resolvable:$true] %s23
      %26 = dma.hbm_to_vmem [thread:$0]  %s22, 128, %s24, [#allocation3]
    $region5: #{tpu_custom_call.1} parent=1 // pred_fallthru
      _
    // Predicated region
    $region6: #{tpu_custom_call.1} parent=1 // pred_check
      _
    $region7: #{tpu_custom_call.1} parent=1 // pred_check_branch
      %28 = sbr.rel (0) target = $region9
    $region8: #{tpu_custom_call.1} parent=1 // pred_region
      %30 = vsyncadd [#allocation6], 0
      %s31 = sshll.u32 %s1, 4
      %s32 = int_to_ptr.hbm [resolvable:$true] %s31
      %s33 = sshll.u32 [#allocation5], 4
      %s34 = int_to_ptr.vmem [resolvable:$true] %s33
      %39 = dma.hbm_to_vmem [thread:$0]  %s32, 2048, %s34, [#allocation6], 128, 128, 8
    $region9: #{tpu_custom_call.1} parent=1 // pred_fallthru
      _
    // Predicated region
    $region10: #{tpu_custom_call.1} parent=1 // pred_check
      _
    $region11: #{tpu_custom_call.1} parent=1 // pred_check_branch
      %41 = sbr.rel (0) target = $region13
    $region12: #{tpu_custom_call.1} parent=1 // pred_region
      _
    $region13: #{tpu_custom_call.1} parent=1 // pred_fallthru
      _
    // Predicated region
    $region14: #{tpu_custom_call.1} parent=1 // pred_check
      _
    $region15: #{tpu_custom_call.1} parent=1 // pred_check_branch
      %43 = sbr.rel (0) target = $region17
    $region16: #{tpu_custom_call.1} parent=1 // pred_region
      %45 = vsyncadd [#allocation6], 0
      %s46 = sshll.u32 %s3, 4
      %s47 = int_to_ptr.hbm [resolvable:$true] %s46
      %s48 = sshll.u32 [#allocation7], 4
      %s49 = int_to_ptr.vmem [resolvable:$true] %s48
      %54 = dma.hbm_to_vmem [thread:$0]  %s47, 2048, %s49, [#allocation6], 128, 128, 8
    $region17: #{tpu_custom_call.1} parent=1 // pred_fallthru
      _
    // Predicated region
    $region18: #{tpu_custom_call.1} parent=1 // pred_check
      _
    $region19: #{tpu_custom_call.1} parent=1 // pred_check_branch
      %56 = sbr.rel (0) target = $region21
    $region20: #{tpu_custom_call.1} parent=1 // pred_region
      _
    $region21: #{tpu_custom_call.1} parent=1 // pred_fallthru
      _
    // Predicated region
    $region22: #{tpu_custom_call.1} parent=1 // pred_check
      _
    $region23: #{tpu_custom_call.1} parent=1 // pred_check_branch
      %58 = sbr.rel (0) target = $region25
    $region24: #{tpu_custom_call.1} parent=1 // pred_region
      %60 = vsyncadd [#allocation9], 0
      %s61 = sshll.u32 %s5, 4
      %s62 = int_to_ptr.hbm [resolvable:$true] %s61
      %s63 = sshll.u32 [#allocation8], 4
      %s64 = int_to_ptr.vmem [resolvable:$true] %s63
      %69 = dma.hbm_to_vmem [thread:$0]  %s62, 2048, %s64, [#allocation9], 128, 128, 8
    $region25: #{tpu_custom_call.1} parent=1 // pred_fallthru
      _
    // Predicated region
    $region26: #{tpu_custom_call.1} parent=1 // pred_check
      _
    $region27: #{tpu_custom_call.1} parent=1 // pred_check_branch
      %71 = sbr.rel (0) target = $region29
    $region28: #{tpu_custom_call.1} parent=1 // pred_region
      _
    $region29: #{tpu_custom_call.1} parent=1 // pred_fallthru
      _
    // Predicated region
    $region30: #{tpu_custom_call.1} parent=1 // pred_check
      _
    $region31: #{tpu_custom_call.1} parent=1 // pred_check_branch
      %73 = sbr.rel (0) target = $region33
    $region32: #{tpu_custom_call.1} parent=1 // pred_region
      %75 = dma.done [#allocation3], 128
    $region33: #{tpu_custom_call.1} parent=1 // pred_fallthru
      _
    // Predicated region
    $region34: #{tpu_custom_call.1} parent=1 // pred_check
      _
    $region35: #{tpu_custom_call.1} parent=1 // pred_check_branch
      %77 = sbr.rel (0) target = $region37
    $region36: #{tpu_custom_call.1} parent=1 // pred_region
      %79 = dma.done [#allocation6], 2048
    $region37: #{tpu_custom_call.1} parent=1 // pred_fallthru
      _
    // Predicated region
    $region38: #{tpu_custom_call.1} parent=1 // pred_check
      _
    $region39: #{tpu_custom_call.1} parent=1 // pred_check_branch
      %81 = sbr.rel (0) target = $region41
    $region40: #{tpu_custom_call.1} parent=1 // pred_region
      %83 = dma.done [#allocation6], 2048
    $region41: #{tpu_custom_call.1} parent=1 // pred_fallthru
      _
    // Predicated region
    $region42: #{tpu_custom_call.1} parent=1 // pred_check
      _
    $region43: #{tpu_custom_call.1} parent=1 // pred_check_branch
      %85 = sbr.rel (0) target = $region45
    $region44: #{tpu_custom_call.1} parent=1 // pred_region
      %87 = dma.done [#allocation9], 2048
    $region45: #{tpu_custom_call.1} parent=1 // pred_fallthru
      _
    %v88 = vld [vmem:[#allocation2] sm:$0xff]
    %v89 = vld [vmem:[#allocation5] sm:$0xff]
    %v90 = vld [vmem:[#allocation5 + $0x8] sm:$0xff]
    %v91 = vld [vmem:[#allocation5 + $0x10] sm:$0xff]
    %v92 = vld [vmem:[#allocation5 + $0x18] sm:$0xff]
    %v93 = vld [vmem:[#allocation5 + $0x20] sm:$0xff]
    %v94 = vld [vmem:[#allocation5 + $0x28] sm:$0xff]
    %v95 = vld [vmem:[#allocation5 + $0x30] sm:$0xff]
    %v96 = vld [vmem:[#allocation5 + $0x38] sm:$0xff]
    %v97 = vld [vmem:[#allocation5 + $0x40] sm:$0xff]
    %v98 = vld [vmem:[#allocation5 + $0x48] sm:$0xff]
    %v99 = vld [vmem:[#allocation5 + $0x50] sm:$0xff]
    %v100 = vld [vmem:[#allocation5 + $0x58] sm:$0xff]
    %v101 = vld [vmem:[#allocation5 + $0x60] sm:$0xff]
    %v102 = vld [vmem:[#allocation5 + $0x68] sm:$0xff]
    %v103 = vld [vmem:[#allocation5 + $0x70] sm:$0xff]
    %v104 = vld [vmem:[#allocation5 + $0x78] sm:$0xff]
    %v105 = vld [vmem:[%s2] sm:$0x1]
    %v107 = vperm.slane %v105, 0
    %109 = vmatpush.msra.mxu0 %v104
    %110 = vmatpush.msra.mxu0 %v103
    %111 = vmatpush.msra.mxu0 %v102
    %112 = vmatpush.msra.mxu0 %v101
    %113 = vmatpush.msra.mxu0 %v100
    %114 = vmatpush.msra.mxu0 %v99
    %115 = vmatpush.msra.mxu0 %v98
    %116 = vmatpush.msra.mxu0 %v97
    %117 = vmatpush.msra.mxu0 %v96
    %118 = vmatpush.msra.mxu0 %v95
    %119 = vmatpush.msra.mxu0 %v94
    %120 = vmatpush.msra.mxu0 %v93
    %121 = vmatpush.msra.mxu0 %v92
    %122 = vmatpush.msra.mxu0 %v91
    %123 = vmatpush.msra.mxu0 %v90
    %124 = vmatpush.msra.mxu0 %v89
    %125 = vmatmul.f32.gmra.mxu0 %v88
    %v126 = vpop.f32.mrf.mxu0
    %v127 = vadd.f32 %v107, %v126
    %128 = vdwg.mxu0
    %v129 = vmax.f32 %v127, 0.0
    %130 = vadd.xlane.f32.xlu0 %v129
    %v131 = vpop.xlane.xlu0 %130
    %v132 = vrot.slane %v131, 4
    %v133 = vadd.f32 %v131, %v132
    %v134 = vrot.slane %v133, 2
    %v135 = vadd.f32 %v133, %v134
    %v136 = vrot.slane %v135, 1
    %v137 = vadd.f32 %v135, %v136
    %s138 = vtos %v137
    %p139 = scmp.gt.f32.partialorder %s138, 0.0
    // Predicated region
    $region46: #{tpu_custom_call.1} parent=1 // pred_check
      %p140 = pneg %p139
    $region47: #{tpu_custom_call.1} parent=1 // pred_check_branch
      %142 = sbr.rel (%p140) target = $region49
    $region48: #{tpu_custom_call.1} parent=1 // pred_region
      %v143 = vld [vmem:[#allocation7] sm:$0xff]
      %v144 = vld [vmem:[#allocation7 + $0x8] sm:$0xff]
      %v145 = vld [vmem:[#allocation7 + $0x10] sm:$0xff]
      %v146 = vld [vmem:[#allocation7 + $0x18] sm:$0xff]
      %v147 = vld [vmem:[#allocation7 + $0x20] sm:$0xff]
      %v148 = vld [vmem:[#allocation7 + $0x28] sm:$0xff]
      %v149 = vld [vmem:[#allocation7 + $0x30] sm:$0xff]
      %v150 = vld [vmem:[#allocation7 + $0x38] sm:$0xff]
      %v151 = vld [vmem:[#allocation7 + $0x40] sm:$0xff]
      %v152 = vld [vmem:[#allocation7 + $0x48] sm:$0xff]
      %v153 = vld [vmem:[#allocation7 + $0x50] sm:$0xff]
      %v154 = vld [vmem:[#allocation7 + $0x58] sm:$0xff]
      %v155 = vld [vmem:[#allocation7 + $0x60] sm:$0xff]
      %v156 = vld [vmem:[#allocation7 + $0x68] sm:$0xff]
      %v157 = vld [vmem:[#allocation7 + $0x70] sm:$0xff]
      %v158 = vld [vmem:[#allocation7 + $0x78] sm:$0xff]
      %v159 = vld [vmem:[%s4] sm:$0x1]
      %v161 = vperm.slane %v159, 0
      %163 = vmatpush.msra.mxu0 %v158
      %164 = vmatpush.msra.mxu0 %v157
      %165 = vmatpush.msra.mxu0 %v156
      %166 = vmatpush.msra.mxu0 %v155
      %167 = vmatpush.msra.mxu0 %v154
      %168 = vmatpush.msra.mxu0 %v153
      %169 = vmatpush.msra.mxu0 %v152
      %170 = vmatpush.msra.mxu0 %v151
      %171 = vmatpush.msra.mxu0 %v150
      %172 = vmatpush.msra.mxu0 %v149
      %173 = vmatpush.msra.mxu0 %v148
      %174 = vmatpush.msra.mxu0 %v147
      %175 = vmatpush.msra.mxu0 %v146
      %176 = vmatpush.msra.mxu0 %v145
      %177 = vmatpush.msra.mxu0 %v144
      %178 = vmatpush.msra.mxu0 %v143
      %179 = vmatmul.f32.gmra.mxu0 %v129
      %v180 = vpop.f32.mrf.mxu0
      %v181 = vadd.f32 %v161, %v180
      %182 = vdwg.mxu0
      %183 = vst [vmem:[#allocation10] sm:$0xff] %v181
    $region49: #{tpu_custom_call.1} parent=1 // pred_fallthru
      _
    %p184 = pneg %p139
    // Predicated region
    $region50: #{tpu_custom_call.1} parent=1 // pred_check
      _
    $region51: #{tpu_custom_call.1} parent=1 // pred_check_branch
      %186 = sbr.rel (%p139) target = $region53
    $region52: #{tpu_custom_call.1} parent=1 // pred_region
      %v187 = vld [vmem:[#allocation8] sm:$0xff]
      %v188 = vld [vmem:[#allocation8 + $0x8] sm:$0xff]
      %v189 = vld [vmem:[#allocation8 + $0x10] sm:$0xff]
      %v190 = vld [vmem:[#allocation8 + $0x18] sm:$0xff]
      %v191 = vld [vmem:[#allocation8 + $0x20] sm:$0xff]
      %v192 = vld [vmem:[#allocation8 + $0x28] sm:$0xff]
      %v193 = vld [vmem:[#allocation8 + $0x30] sm:$0xff]
      %v194 = vld [vmem:[#allocation8 + $0x38] sm:$0xff]
      %v195 = vld [vmem:[#allocation8 + $0x40] sm:$0xff]
      %v196 = vld [vmem:[#allocation8 + $0x48] sm:$0xff]
      %v197 = vld [vmem:[#allocation8 + $0x50] sm:$0xff]
      %v198 = vld [vmem:[#allocation8 + $0x58] sm:$0xff]
      %v199 = vld [vmem:[#allocation8 + $0x60] sm:$0xff]
      %v200 = vld [vmem:[#allocation8 + $0x68] sm:$0xff]
      %v201 = vld [vmem:[#allocation8 + $0x70] sm:$0xff]
      %v202 = vld [vmem:[#allocation8 + $0x78] sm:$0xff]
      %v203 = vld [vmem:[%s6] sm:$0x1]
      %v205 = vperm.slane %v203, 0
      %207 = vmatpush.msra.mxu0 %v202
      %208 = vmatpush.msra.mxu0 %v201
      %209 = vmatpush.msra.mxu0 %v200
      %210 = vmatpush.msra.mxu0 %v199
      %211 = vmatpush.msra.mxu0 %v198
      %212 = vmatpush.msra.mxu0 %v197
      %213 = vmatpush.msra.mxu0 %v196
      %214 = vmatpush.msra.mxu0 %v195
      %215 = vmatpush.msra.mxu0 %v194
      %216 = vmatpush.msra.mxu0 %v193
      %217 = vmatpush.msra.mxu0 %v192
      %218 = vmatpush.msra.mxu0 %v191
      %219 = vmatpush.msra.mxu0 %v190
      %220 = vmatpush.msra.mxu0 %v189
      %221 = vmatpush.msra.mxu0 %v188
      %222 = vmatpush.msra.mxu0 %v187
      %223 = vmatmul.f32.gmra.mxu0 %v129
      %v224 = vpop.f32.mrf.mxu0
      %v225 = vadd.f32 %v205, %v224
      %226 = vdwg.mxu0
      %227 = vst [vmem:[#allocation10] sm:$0xff] %v225
    $region53: #{tpu_custom_call.1} parent=1 // pred_fallthru
      _
    // Predicated region
    $region54: #{tpu_custom_call.1} parent=1 // pred_check
      _
    $region55: #{tpu_custom_call.1} parent=1 // pred_check_branch
      %229 = sbr.rel (0) target = $region57
    $region56: #{tpu_custom_call.1} parent=1 // pred_region
      %231 = vsyncadd [#allocation4], 0
      %s233 = sshll.u32 [#allocation10], 4
      %s234 = int_to_ptr.vmem [resolvable:$true] %s233
      %s235 = sshll.u32 %s7, 4
      %s236 = int_to_ptr.hbm [resolvable:$true] %s235
      %238 = dma.vmem_to_hbm [thread:$0]  %s234, 128, %s236, [#allocation4]
    $region57: #{tpu_custom_call.1} parent=1 // pred_fallthru
      _
    // Predicated region
    $region58: #{tpu_custom_call.1} parent=1 // pred_check
      _
    $region59: #{tpu_custom_call.1} parent=1 // pred_check_branch
      %240 = sbr.rel (0) target = $region61
    $region60: #{tpu_custom_call.1} parent=1 // pred_region
      %242 = dma.done [#allocation4], 128
    $region61: #{tpu_custom_call.1} parent=1 // pred_fallthru
      _
    %243 = vsyncpa [#allocation3], 1
    %244 = vsyncpa [#allocation6], 1
    %245 = vsyncpa [#allocation9], 1
    %246 = vsyncpa [#allocation4], 1

</llo_original>
